<compile_context>
chip_gen: v7x
topology: tpu7x:2x2x1
jax: 0.10.0
libtpu: 0.0.40
codegen_flags: <defaults>
</compile_context>

<pallas_src>
import math
import re
import functools

import jax
import jax.numpy as jnp
from jax.experimental import pallas as pl
from jax.experimental.pallas import tpu as pltpu

_MiB = 1024 * 1024


def find_multiple(n: int, k: int) -> int:
    if n % k == 0:
        return n
    return n + k - n % k


def _round_up(n: int, k: int) -> int:
    return ((n + k - 1) // k) * k


@functools.lru_cache(maxsize=1)
def _tpu_generation() -> int:
    """Best-effort TPU generation (5 / 6 / 7); defaults to 6 when unknown."""
    try:
        kind = jax.devices()[0].device_kind.lower()
    except Exception:  # pragma: no cover - no devices / CPU fallback
        return 6
    m = re.search(r"(\d+)", kind)
    return int(m.group(1)) if m else 6


def _gen_config(gen: int) -> dict:
    """Per-generation tiling / VMEM heuristics."""
    if gen >= 7:
        # v7x: 64 MiB physical VMEM per TensorCore -> leave real headroom.
        return dict(tm=512, granule=256, vmem_cap=56 * _MiB,
                    weight_budget=36 * _MiB, th_want=512)
    if gen == 6:
        # v6e: 128 MiB physical VMEM; weight-streaming bound until tm ~650.
        return dict(tm=1024, granule=256, vmem_cap=100 * _MiB,
                    weight_budget=72 * _MiB, th_want=512)
    # v5e (and older): 128 MiB VMEM, 128-wide MXU, only 1 vst slot -> big th.
    return dict(tm=512, granule=128, vmem_cap=100 * _MiB,
                weight_budget=72 * _MiB, th_want=1024)


def _pick_hidden_tile(H: int, D: int, itemsize: int, want: int,
                      weight_budget_bytes: int) -> int:
    """Lane-aligned hidden tile <= want whose double-buffered weight blocks
    (w13: D*2*th, w2^T: th*D) fit the per-generation weight budget."""
    t = min(_round_up(want, 128), _round_up(H, 128))
    t = max(t, 128)
    while t > 128 and 2 * 3 * t * D * itemsize > weight_budget_bytes:
        t -= 128
    return t


def prepare_ffn_weights(w1, w2, w3, *, th=None, dtype=jnp.bfloat16):
    """One-time conversion of PyTorch-layout weights into the persistent,
    kernel-friendly layout (do NOT call this per forward step).

      w1, w3 : (H, D)   w2 : (D, H)
    Returns:
      w13t : (Hb, D, 2*th)  -- block j holds [w1^T block j | w3^T block j]
      w2t  : (Hb, th, D)    -- block j holds rows [j*th, (j+1)*th) of w2^T

    The hidden dim is zero-padded to a multiple of th; padded columns
    contribute exactly zero to the output (silu(0)*0 = 0, zero w2 rows).
    bf16 operands by default on every generation (f32 accumulation happens
    inside the kernel).
    """
    # TODO(synk): on v7x, store fp8 weights (+ per-block scale applied after
    # the matmul) instead of bf16 to halve weight-streaming bytes.
    H, D = w1.shape
    assert w3.shape == (H, D) and w2.shape == (D, H)
    if dtype is not None:
        w1 = w1.astype(dtype)
        w2 = w2.astype(dtype)
        w3 = w3.astype(dtype)

    cfg = _gen_config(_tpu_generation())
    want = th if th is not None else cfg["th_want"]
    itemsize = jnp.dtype(w1.dtype).itemsize
    th = _pick_hidden_tile(H, D, itemsize, want, cfg["weight_budget"])

    Hpad = _round_up(H, th)
    if Hpad != H:
        pad = Hpad - H
        w1 = jnp.pad(w1, ((0, pad), (0, 0)))
        w3 = jnp.pad(w3, ((0, pad), (0, 0)))
        w2 = jnp.pad(w2, ((0, 0), (0, pad)))
    Hb = Hpad // th

    w1t = w1.T.reshape(D, Hb, th)                     # (D, Hb, th)
    w3t = w3.T.reshape(D, Hb, th)                     # (D, Hb, th)
    w13t = jnp.concatenate([w1t, w3t], axis=-1)       # (D, Hb, 2*th)
    w13t = jnp.transpose(w13t, (1, 0, 2))             # (Hb, D, 2*th)
    w2t = w2.T.reshape(Hb, th, D)                     # (Hb, th, D)
    return w13t, w2t


def _ffn_kernel(x_ref, w13_ref, w2t_ref, o_ref, acc_ref):
    # x_ref:   (tm, D)        w13_ref: (D, 2*th)
    # w2t_ref: (th, D)        o_ref:   (tm, D)    acc_ref: (tm, D) f32
    #
    # NOTE: the hidden (reduction) axis MUST remain the LAST grid axis
    # ("arbitrary"); the accumulator init at j == 0 and write-back at
    # j == last rely on all j steps of one m tile running back-to-back.
    j = pl.program_id(1)

    @pl.when(j == 0)
    def _():
        acc_ref[...] = jnp.zeros_like(acc_ref)

    th = w2t_ref.shape[0]
    x = x_ref[...]

    # Fused gate+up projection on the MXU (bf16 operands by default on every
    # generation -- the MXU is bf16-native on v5e/v6e/v7x), f32 accumulation.
    h13 = jnp.dot(x, w13_ref[...], preferred_element_type=jnp.float32)
    h1 = h13[:, :th]
    h3 = h13[:, th:]

    # SiLU(h1) * h3 stays in f32 on the VPU/EUP for accuracy (and because the
    # v5e VPU has no bf16 ALU); only the MXU operands are narrow.
    h = (h1 * jax.nn.sigmoid(h1)) * h3

    # Partial down-projection, accumulated across the hidden-dim grid axis.
    acc_ref[...] += jnp.dot(h.astype(w2t_ref.dtype), w2t_ref[...],
                            preferred_element_type=jnp.float32)

    @pl.when(j == pl.num_programs(1) - 1)
    def _():
        o_ref[...] = acc_ref[...].astype(o_ref.dtype)


def _weight_spec(block_shape, index_map, nbuf):
    """Weight BlockSpec; requests nbuf-deep streaming when supported."""
    if nbuf > 2 and hasattr(pl, "Buffered"):
        try:
            return pl.BlockSpec(block_shape, index_map,
                                pipeline_mode=pl.Buffered(nbuf))
        except TypeError:  # older jax without pipeline_mode kwarg
            pass
    return pl.BlockSpec(block_shape, index_map)


@functools.partial(jax.jit, static_argnames=("tm_eff", "nbuf_w", "vmem_limit"))
def _ffn_forward(x, w13t, w2t, *, tm_eff, nbuf_w, vmem_limit):
    B, S, D = x.shape
    Hb, _, th2 = w13t.shape
    th = th2 // 2
    H = Hb * th
    matmul_dtype = w13t.dtype
    out_dtype = x.dtype
    itm = jnp.dtype(matmul_dtype).itemsize
    iout = jnp.dtype(out_dtype).itemsize

    M = B * S
    Mpad = _round_up(M, tm_eff)
    x2d = x.reshape(M, D).astype(matmul_dtype)
    if Mpad != M:
        x2d = jnp.pad(x2d, ((0, Mpad - M), (0, 0)))
    n_m_tiles = Mpad // tm_eff

    # Scheduler hint: weights are re-streamed once per M tile.
    cost = pl.CostEstimate(
        flops=6 * Mpad * D * H,               # two (M,D,H) + one (M,H,D) matmul
        transcendentals=Mpad * H,             # sigmoid
        bytes_accessed=(Mpad * D * itm
                        + n_m_tiles * 3 * D * H * itm
                        + Mpad * D * iout),
    )

    out = pl.pallas_call(
        _ffn_kernel,
        out_shape=jax.ShapeDtypeStruct((Mpad, D), out_dtype),
        grid_spec=pltpu.PrefetchScalarGridSpec(
            num_scalar_prefetch=0,
            grid=(n_m_tiles, Hb),             # hidden (reduction) axis LAST
            in_specs=[
                pl.BlockSpec((tm_eff, D), lambda i, j: (i, 0)),          # x tile
                _weight_spec((None, D, 2 * th), lambda i, j: (j, 0, 0),  # w1|w3
                             nbuf_w),
                _weight_spec((None, th, D), lambda i, j: (j, 0, 0),      # w2^T
                             nbuf_w),
            ],
            out_specs=pl.BlockSpec((tm_eff, D), lambda i, j: (i, 0)),
            scratch_shapes=[pltpu.VMEM((tm_eff, D), jnp.float32)],
        ),
        compiler_params=pltpu.CompilerParams(
            dimension_semantics=("parallel", "arbitrary"),
            vmem_limit_bytes=int(vmem_limit),
        ),
        cost_estimate=cost,
    )(x2d, w13t, w2t)

    return out[:M].reshape(B, S, D)


def feed_forward_pallas(x, w13t, w2t, *, tm=None):
    """x: (batch, seq, dim); w13t/w2t from prepare_ffn_weights()."""
    cfg = _gen_config(_tpu_generation())
    B, S, D = x.shape
    Hb, _, th2 = w13t.shape
    th = th2 // 2
    M = B * S
    itm = jnp.dtype(w13t.dtype).itemsize
    iout = jnp.dtype(x.dtype).itemsize

    granule = cfg["granule"]
    tm_target = _round_up(tm, granule) if tm is not None else cfg["tm"]

    # Token tile: full MXU-friendly tile when M is large, otherwise round the
    # token count up to the sublane-packing granule (16 for bf16, 8 for f32).
    min_align = 16 if itm < 4 else 8
    if M >= tm_target:
        tm_eff = tm_target
    else:
        tm_eff = max(min_align, _round_up(M, min_align))

    def vmem_bytes(tmv, nbw):
        return (2 * tmv * D * itm            # x double buffer
                + nbw * 3 * th * D * itm     # w13 (D,2th) + w2^T (th,D) blocks
                + 2 * tmv * D * iout         # out double buffer
                + tmv * D * 4                # f32 accumulator scratch
                + tmv * 3 * th * 4)          # f32 intermediates h13 + h

    # Shrink tm until the working set (2 weight buffers) fits under the cap.
    while tm_eff > granule and vmem_bytes(tm_eff, 2) > cfg["vmem_cap"] - 4 * _MiB:
        tm_eff -= granule

    # Third weight buffer only when it pays off (>=3 hidden blocks) and fits.
    nbuf_w = 2
    if (Hb >= 3 and hasattr(pl, "Buffered")
            and vmem_bytes(tm_eff, 3) <= cfg["vmem_cap"] - 4 * _MiB):
        nbuf_w = 3

    vmem_limit = int(min(cfg["vmem_cap"],
                         max(32 * _MiB, vmem_bytes(tm_eff, nbuf_w) + 8 * _MiB)))

    try:
        return _ffn_forward(x, w13t, w2t, tm_eff=tm_eff, nbuf_w=nbuf_w,
                            vmem_limit=vmem_limit)
    except Exception:
        if nbuf_w > 2:
            # Fallback for jax builds where Buffered weight streaming is
            # unsupported at lowering time.
            return _ffn_forward(x, w13t, w2t, tm_eff=tm_eff, nbuf_w=2,
                                vmem_limit=vmem_limit)
        raise


def feed_forward_ref(x, w1, w2, w3):
    h1 = jnp.einsum("bsd,hd->bsh", x, w1)
    h3 = jnp.einsum("bsd,hd->bsh", x, w3)
    h = jax.nn.silu(h1) * h3
    return jnp.einsum("bsh,dh->bsd", h, w2)


if __name__ == "__main__":
    # Module config (small but TPU-tile-friendly).
    dim = 128
    hidden_dim_arg = 256
    multiple_of = 128
    hidden_dim = find_multiple(int(2 * hidden_dim_arg / 3), multiple_of)  # -> 256

    batch, seq = 2, 8
    dtype = jnp.float32

    key = jax.random.PRNGKey(0)
    kx, k1, k2, k3, kx2, k1b, k2b, k3b = jax.random.split(key, 8)

    # Deterministic nn.Linear-style init: U(-1/sqrt(fan_in), 1/sqrt(fan_in)).
    def linear_init(k, out_f, in_f):
        bound = 1.0 / math.sqrt(in_f)
        return jax.random.uniform(k, (out_f, in_f), dtype=dtype,
                                  minval=-bound, maxval=bound)

    w1 = linear_init(k1, hidden_dim, dim)   # (H, D)
    w2 = linear_init(k2, dim, hidden_dim)   # (D, H)
    w3 = linear_init(k3, hidden_dim, dim)   # (H, D)

    x = jax.random.normal(kx, (batch, seq, dim), dtype=dtype)
    ref = feed_forward_ref(x, w1, w2, w3)

    # --- default path: bf16 MXU operands, f32 SiLU + accumulation ----------
    w13t, w2t = prepare_ffn_weights(w1, w2, w3)            # one-time, bf16 default
    out = jax.block_until_ready(feed_forward_pallas(x, w13t, w2t))
    assert out.shape == (batch, seq, dim)
    assert jnp.allclose(out, ref, atol=3e-2, rtol=3e-2), "bf16 mismatch vs ref"

    # --- f32 operand path (tight tolerance check) ---------------------------
    w13t_f32, w2t_f32 = prepare_ffn_weights(w1, w2, w3, dtype=jnp.float32)
    out_f32 = jax.block_until_ready(feed_forward_pallas(x, w13t_f32, w2t_f32))
    assert jnp.allclose(out_f32, ref, atol=1e-4, rtol=1e-4), "f32 mismatch vs ref"

    # --- ragged token count (exercises the padded tail) ---------------------
    x_ragged = jax.random.normal(kx2, (batch, 7, dim), dtype=dtype)  # M = 14
    out_r = jax.block_until_ready(feed_forward_pallas(x_ragged, w13t_f32, w2t_f32))
    ref_r = feed_forward_ref(x_ragged, w1, w2, w3)
    assert out_r.shape == (batch, 7, dim)
    assert jnp.allclose(out_r, ref_r, atol=1e-4, rtol=1e-4), "ragged mismatch"

    # --- multi-block hidden axis: exercises the K-split accumulation and the
    #     3-deep weight streaming path (Hb = 3) ------------------------------
    hidden_dim2 = find_multiple(int(2 * 576 / 3), multiple_of)  # -> 384
    w1b = linear_init(k1b, hidden_dim2, dim)
    w2b = linear_init(k2b, dim, hidden_dim2)
    w3b = linear_init(k3b, hidden_dim2, dim)
    ref_b = feed_forward_ref(x, w1b, w2b, w3b)
    w13t_b, w2t_b = prepare_ffn_weights(w1b, w2b, w3b, th=128,
                                        dtype=jnp.float32)      # Hb = 3
    out_b = jax.block_until_ready(feed_forward_pallas(x, w13t_b, w2t_b))
    assert jnp.allclose(out_b, ref_b, atol=1e-4, rtol=1e-4), "Hb>1 mismatch"

    print("KERNEL_OK")
</pallas_src>

<mosaic_0001>
module attributes {stable_mosaic.version = 11 : i64} {
  func.func @_ffn_kernel(%arg0: i32, %arg1: i32, %arg2: memref<16x128xbf16, #tpu.memory_space<vmem>>, %arg3: memref<1x128x512xbf16, #tpu.memory_space<vmem>>, %arg4: memref<1x256x128xbf16, #tpu.memory_space<vmem>>, %arg5: memref<16x128xf32, #tpu.memory_space<vmem>>, %arg6: memref<16x128xf32, #tpu.memory_space<vmem>>) attributes {dimension_semantics = [#tpu.dimension_semantics<parallel>, #tpu.dimension_semantics<arbitrary>], iteration_bounds = array<i64: 1, 1>, scalar_prefetch = 0 : i64, scratch_operands = 1 : i64, tpu.core_type = #tpu.core_type<tc>, window_params = [{transform_indices = @transform_0, window_bounds = array<i64: 16, 128>}, {transform_indices = @transform_1, window_bounds = array<i64: 1, 128, 512>}, {transform_indices = @transform_2, window_bounds = array<i64: 1, 256, 128>}, {transform_indices = @transform_3, window_bounds = array<i64: 16, 128>}]} {
    %c0_i32 = arith.constant 0 : i32
    %0 = arith.cmpi eq, %arg1, %c0_i32 : i32
    %1 = arith.extui %0 : i1 to i32
    %c0_i32_0 = arith.constant 0 : i32
    %2 = arith.cmpi ne, %1, %c0_i32_0 : i32
    scf.if %2 {
      %cst_16 = arith.constant 0.000000e+00 : f32
      %26 = vector.broadcast %cst_16 : f32 to vector<16x128xf32>
      %c0_17 = arith.constant 0 : index
      %c0_18 = arith.constant 0 : index
      %27 = vector.load %arg6[%c0_17, %c0_18] : memref<16x128xf32, #tpu.memory_space<vmem>>, vector<16x128xf32>
      tpu.vector_store %arg6[%c0_17, %c0_18], %26 {strides = array<i32>} : memref<16x128xf32, #tpu.memory_space<vmem>>, vector<16x128xf32>,
    } else {
    }
    %c0 = arith.constant 0 : index
    %c0_1 = arith.constant 0 : index
    %3 = vector.load %arg2[%c0, %c0_1] : memref<16x128xbf16, #tpu.memory_space<vmem>>, vector<16x128xbf16>
    %c0_2 = arith.constant 0 : index
    %c0_3 = arith.constant 0 : index
    %c0_4 = arith.constant 0 : index
    %4 = vector.load %arg3[%c0_2, %c0_3, %c0_4] : memref<1x128x512xbf16, #tpu.memory_space<vmem>>, vector<1x128x512xbf16>
    %5 = vector.shape_cast %4 : vector<1x128x512xbf16> to vector<128x512xbf16>
    %cst = arith.constant dense<0.000000e+00> : vector<16x512xf32>
    %6 = tpu.matmul %3, %5, %cst {dimension_numbers = #tpu.dot_dimension_numbers<[1], [0], [0], [1], [0, 0, 1, 1], [], []>} : vector<16x128xbf16>, vector<128x512xbf16>, vector<16x512xf32> -> vector<16x512xf32>
    %7 = vector.extract_strided_slice %6 {offsets = [0, 0], sizes = [16, 256], strides = [1, 1]} : vector<16x512xf32> to vector<16x256xf32>
    %8 = vector.extract_strided_slice %6 {offsets = [0, 256], sizes = [16, 256], strides = [1, 1]} : vector<16x512xf32> to vector<16x256xf32>
    %9 = arith.negf %7 : vector<16x256xf32>
    %10 = math.exp %9 : vector<16x256xf32>
    %cst_5 = arith.constant 1.000000e+00 : f32
    %11 = vector.broadcast %cst_5 : f32 to vector<16x256xf32>
    %12 = arith.addf %11, %10 : vector<16x256xf32>
    %13 = arith.divf %11, %12 : vector<16x256xf32>
    %14 = arith.mulf %7, %13 : vector<16x256xf32>
    %15 = arith.mulf %14, %8 : vector<16x256xf32>
    %c0_6 = arith.constant 0 : index
    %c0_7 = arith.constant 0 : index
    %16 = vector.load %arg6[%c0_6, %c0_7] : memref<16x128xf32, #tpu.memory_space<vmem>>, vector<16x128xf32>
    %17 = arith.truncf %15 : vector<16x256xf32> to vector<16x256xbf16>
    %c0_8 = arith.constant 0 : index
    %c0_9 = arith.constant 0 : index
    %c0_10 = arith.constant 0 : index
    %18 = vector.load %arg4[%c0_8, %c0_9, %c0_10] : memref<1x256x128xbf16, #tpu.memory_space<vmem>>, vector<1x256x128xbf16>
    %19 = vector.shape_cast %18 : vector<1x256x128xbf16> to vector<256x128xbf16>
    %cst_11 = arith.constant dense<0.000000e+00> : vector<16x128xf32>
    %20 = tpu.matmul %17, %19, %cst_11 {dimension_numbers = #tpu.dot_dimension_numbers<[1], [0], [0], [1], [0, 0, 1, 1], [], []>} : vector<16x256xbf16>, vector<256x128xbf16>, vector<16x128xf32> -> vector<16x128xf32>
    %21 = arith.addf %16, %20 : vector<16x128xf32>
    %c0_12 = arith.constant 0 : index
    %c0_13 = arith.constant 0 : index
    %22 = vector.load %arg6[%c0_12, %c0_13] : memref<16x128xf32, #tpu.memory_space<vmem>>, vector<16x128xf32>
    tpu.vector_store %arg6[%c0_12, %c0_13], %21 {strides = array<i32>} : memref<16x128xf32, #tpu.memory_space<vmem>>, vector<16x128xf32>,
    %c0_i32_14 = arith.constant 0 : i32
    %23 = arith.cmpi eq, %arg1, %c0_i32_14 : i32
    %24 = arith.extui %23 : i1 to i32
    %c0_i32_15 = arith.constant 0 : i32
    %25 = arith.cmpi ne, %24, %c0_i32_15 : i32
    scf.if %25 {
      %c0_16 = arith.constant 0 : index
      %c0_17 = arith.constant 0 : index
      %26 = vector.load %arg6[%c0_16, %c0_17] : memref<16x128xf32, #tpu.memory_space<vmem>>, vector<16x128xf32>
      %c0_18 = arith.constant 0 : index
      %c0_19 = arith.constant 0 : index
      %27 = vector.load %arg5[%c0_18, %c0_19] : memref<16x128xf32, #tpu.memory_space<vmem>>, vector<16x128xf32>
      tpu.vector_store %arg5[%c0_18, %c0_19], %26 {strides = array<i32>} : memref<16x128xf32, #tpu.memory_space<vmem>>, vector<16x128xf32>,
    } else {
    }
    return
  }
  func.func @transform_0(%arg0: i32, %arg1: i32) -> (i32, i32) {
    %c0_i32 = arith.constant 0 : i32
    %c0_i32_0 = arith.constant 0 : i32
    return %arg0, %c0_i32 : i32, i32
  }
  func.func @transform_1(%arg0: i32, %arg1: i32) -> (i32, i32, i32) {
    %c0_i32 = arith.constant 0 : i32
    %c0_i32_0 = arith.constant 0 : i32
    %c0_i32_1 = arith.constant 0 : i32
    return %arg1, %c0_i32, %c0_i32_0 : i32, i32, i32
  }
  func.func @transform_2(%arg0: i32, %arg1: i32) -> (i32, i32, i32) {
    %c0_i32 = arith.constant 0 : i32
    %c0_i32_0 = arith.constant 0 : i32
    %c0_i32_1 = arith.constant 0 : i32
    return %arg1, %c0_i32, %c0_i32_0 : i32, i32, i32
  }
  func.func @transform_3(%arg0: i32, %arg1: i32) -> (i32, i32) {
    %c0_i32 = arith.constant 0 : i32
    %c0_i32_0 = arith.constant 0 : i32
    return %arg0, %c0_i32 : i32, i32
  }
}

</mosaic_0001>

<llo_original>
// kernel: _ffn_forward.1
$region0: #{_ffn_forward.1}
  #allocation0 [shape = 'u32[]', space=smem, size = 0x4, offset = 0x4, fixed_abs, tag = 'smem constant byte address 0x4 - core index']
  #allocation1 [shape = 'u32[144,128]{1,0:T(1,128)}', space=vmem, size = 0x12000, scoped, tag = 'internal scratch']
  #allocation2 [shape = 'f32[16,128]{1,0:T(8,128)}', space=vmem, size = 0x2000, scoped, tag = 'scratch operand']
  %s0 = inlined_call_operand.vmem [shape: bf16[16,128], index: 0, kind: input, shape index: {}]
  %s1 = inlined_call_operand.hbm [shape: bf16[1,128,512], index: 1, kind: input, shape index: {}]
  %s2 = inlined_call_operand.hbm [shape: bf16[1,256,128], index: 2, kind: input, shape index: {}]
  %s3 = inlined_call_operand.hbm [shape: f32[16,128], index: 3, kind: output, shape index: {}]
  %s4 = sld [smem:[#allocation0]]
  $region38: #{_ffn_forward.1} parent=0
    _
  %s6 = ssub.s32 1, %s4
  %s7 = scalar_select 0, %s6, %s4
  $region1: #{_ffn_forward.1} parent=0
    #allocation3 [shape = 'u8[131072]{0}', space=vmem, size = 0x20000, scoped, tag = 'input window, operand 1, single buffered']
    #allocation4 [shape = 's32[1]{0}', space=sflag, size = 0x4, scoped, tag = 'scoped memory for _ffn_forward.1']
    #allocation5 [shape = 's32[1]{0}', space=sflag, size = 0x4, scoped, tag = 'scoped memory for _ffn_forward.1']
    #allocation6 [shape = 'u8[65536]{0}', space=vmem, size = 0x10000, scoped, tag = 'input window, operand 2, single buffered']
    #allocation7 [shape = 's32[1]{0}', space=sflag, size = 0x4, scoped, tag = 'scoped memory for _ffn_forward.1']
    #allocation8 [shape = 'u8[8192]{0}', space=vmem, size = 0x2000, scoped, tag = 'output window, operand 0, single buffered']
    %8 = vsyncpa [#allocation4], 0
    %9 = vsyncpa [#allocation7], 0
    %10 = vsyncpa [#allocation5], 0
    // Predicated region
    $region2: #{_ffn_forward.1} parent=1 // pred_check
      _
    $region3: #{_ffn_forward.1} parent=1 // pred_check_branch
      %12 = sbr.rel (0) target = $region5
    $region4: #{_ffn_forward.1} parent=1 // pred_region
      _
    $region5: #{_ffn_forward.1} parent=1 // pred_fallthru
      _
    // Predicated region
    $region6: #{_ffn_forward.1} parent=1 // pred_check
      _
    $region7: #{_ffn_forward.1} parent=1 // pred_check_branch
      %14 = sbr.rel (0) target = $region9
    $region8: #{_ffn_forward.1} parent=1 // pred_region
      %s16 = ssub.s32 4096, 4096
      %17 = vsyncadd [#allocation4], %s16
      %s18 = sshll.u32 [#allocation3], 4
      %s19 = int_to_ptr.vmem [resolvable:$true] %s18
      %24 = dma.hbm_to_vmem [thread:$0]  %s1, 4096, %s19, [#allocation4], 256, 256, 16
    $region9: #{_ffn_forward.1} parent=1 // pred_fallthru
      _
    // Predicated region
    $region10: #{_ffn_forward.1} parent=1 // pred_check
      _
    $region11: #{_ffn_forward.1} parent=1 // pred_check_branch
      %26 = sbr.rel (0) target = $region13
    $region12: #{_ffn_forward.1} parent=1 // pred_region
      %s28 = ssub.s32 2048, 2048
      %29 = vsyncadd [#allocation7], %s28
      %s30 = sshll.u32 [#allocation6], 4
      %s31 = int_to_ptr.vmem [resolvable:$true] %s30
      %36 = dma.hbm_to_vmem [thread:$0]  %s2, 2048, %s31, [#allocation7], 64, 64, 4
    $region13: #{_ffn_forward.1} parent=1 // pred_fallthru
      _
    // Predicated region
    $region14: #{_ffn_forward.1} parent=1 // pred_check
      _
    $region15: #{_ffn_forward.1} parent=1 // pred_check_branch
      %38 = sbr.rel (0) target = $region17
    $region16: #{_ffn_forward.1} parent=1 // pred_region
      %39 = dma.done [#allocation4], 4096
    $region17: #{_ffn_forward.1} parent=1 // pred_fallthru
      _
    // Predicated region
    $region18: #{_ffn_forward.1} parent=1 // pred_check
      _
    $region19: #{_ffn_forward.1} parent=1 // pred_check_branch
      %41 = sbr.rel (0) target = $region21
    $region20: #{_ffn_forward.1} parent=1 // pred_region
      %42 = dma.done [#allocation7], 2048
    $region21: #{_ffn_forward.1} parent=1 // pred_fallthru
      _
    %p44 = scmp.eq.s32.totalorder 0, 0
    // Predicated region
    $region22: #{_ffn_forward.1} parent=1 // pred_check
      %p45 = pneg %p44
    $region23: #{_ffn_forward.1} parent=1 // pred_check_branch
      %47 = sbr.rel (%p45) target = $region25
    $region24: #{_ffn_forward.1} parent=1 // pred_region
      %48 = vst [vmem:[#allocation2] sm:$0xff] 0.0
      %49 = vst [vmem:[#allocation2 + $0x8] sm:$0xff] 0.0
    $region25: #{_ffn_forward.1} parent=1 // pred_fallthru
      _
    %v50 = vld [vmem:[%s0] sm:$0xf]
    %v51 = vld [vmem:[%s0 + $0x4] sm:$0xf]
    %v52 = vld [vmem:[#allocation3] sm:$0xff]
    %v53 = vld [vmem:[#allocation3 + $0x8] sm:$0xff]
    %v54 = vld [vmem:[#allocation3 + $0x10] sm:$0xff]
    %v55 = vld [vmem:[#allocation3 + $0x18] sm:$0xff]
    %v56 = vld [vmem:[#allocation3 + $0x20] sm:$0xff]
    %v57 = vld [vmem:[#allocation3 + $0x28] sm:$0xff]
    %v58 = vld [vmem:[#allocation3 + $0x30] sm:$0xff]
    %v59 = vld [vmem:[#allocation3 + $0x38] sm:$0xff]
    %v60 = vld [vmem:[#allocation3 + $0x40] sm:$0xff]
    %v61 = vld [vmem:[#allocation3 + $0x48] sm:$0xff]
    %v62 = vld [vmem:[#allocation3 + $0x50] sm:$0xff]
    %v63 = vld [vmem:[#allocation3 + $0x58] sm:$0xff]
    %v64 = vld [vmem:[#allocation3 + $0x60] sm:$0xff]
    %v65 = vld [vmem:[#allocation3 + $0x68] sm:$0xff]
    %v66 = vld [vmem:[#allocation3 + $0x70] sm:$0xff]
    %v67 = vld [vmem:[#allocation3 + $0x78] sm:$0xff]
    %v68 = vld [vmem:[#allocation3 + $0x80] sm:$0xff]
    %v69 = vld [vmem:[#allocation3 + $0x88] sm:$0xff]
    %v70 = vld [vmem:[#allocation3 + $0x90] sm:$0xff]
    %v71 = vld [vmem:[#allocation3 + $0x98] sm:$0xff]
    %v72 = vld [vmem:[#allocation3 + $0xa0] sm:$0xff]
    %v73 = vld [vmem:[#allocation3 + $0xa8] sm:$0xff]
    %v74 = vld [vmem:[#allocation3 + $0xb0] sm:$0xff]
    %v75 = vld [vmem:[#allocation3 + $0xb8] sm:$0xff]
    %v76 = vld [vmem:[#allocation3 + $0xc0] sm:$0xff]
    %v77 = vld [vmem:[#allocation3 + $0xc8] sm:$0xff]
    %v78 = vld [vmem:[#allocation3 + $0xd0] sm:$0xff]
    %v79 = vld [vmem:[#allocation3 + $0xd8] sm:$0xff]
    %v80 = vld [vmem:[#allocation3 + $0xe0] sm:$0xff]
    %v81 = vld [vmem:[#allocation3 + $0xe8] sm:$0xff]
    %v82 = vld [vmem:[#allocation3 + $0xf0] sm:$0xff]
    %v83 = vld [vmem:[#allocation3 + $0xf8] sm:$0xff]
    %v86 = vunpack.c.l.b16 %v50
    %v87 = vunpack.c.l.b16 %v51
    %v88 = vpack.c.b16 %v87, %v86
    %v122 = vunpack.c.l.b16 %v52
    %v123 = vunpack.c.h.b16 %v52
    %v124 = vunpack.c.l.b16 %v53
    %v125 = vunpack.c.h.b16 %v53
    %v126 = vunpack.c.l.b16 %v54
    %v127 = vunpack.c.h.b16 %v54
    %v128 = vunpack.c.l.b16 %v55
    %v129 = vunpack.c.h.b16 %v55
    %v130 = vunpack.c.l.b16 %v56
    %v131 = vunpack.c.h.b16 %v56
    %v132 = vunpack.c.l.b16 %v57
    %v133 = vunpack.c.h.b16 %v57
    %v134 = vunpack.c.l.b16 %v58
    %v135 = vunpack.c.h.b16 %v58
    %v136 = vunpack.c.l.b16 %v59
    %v137 = vunpack.c.h.b16 %v59
    %v138 = vunpack.c.l.b16 %v60
    %v139 = vunpack.c.h.b16 %v60
    %v140 = vunpack.c.l.b16 %v61
    %v141 = vunpack.c.h.b16 %v61
    %v142 = vunpack.c.l.b16 %v62
    %v143 = vunpack.c.h.b16 %v62
    %v144 = vunpack.c.l.b16 %v63
    %v145 = vunpack.c.h.b16 %v63
    %v146 = vunpack.c.l.b16 %v64
    %v147 = vunpack.c.h.b16 %v64
    %v148 = vunpack.c.l.b16 %v65
    %v149 = vunpack.c.h.b16 %v65
    %v150 = vunpack.c.l.b16 %v66
    %v151 = vunpack.c.h.b16 %v66
    %v152 = vunpack.c.l.b16 %v67
    %v153 = vunpack.c.h.b16 %v67
    %v154 = vunpack.c.l.b16 %v68
    %v155 = vunpack.c.h.b16 %v68
    %v156 = vunpack.c.l.b16 %v69
    %v157 = vunpack.c.h.b16 %v69
    %v158 = vunpack.c.l.b16 %v70
    %v159 = vunpack.c.h.b16 %v70
    %v160 = vunpack.c.l.b16 %v71
    %v161 = vunpack.c.h.b16 %v71
    %v162 = vunpack.c.l.b16 %v72
    %v163 = vunpack.c.h.b16 %v72
    %v164 = vunpack.c.l.b16 %v73
    %v165 = vunpack.c.h.b16 %v73
    %v166 = vunpack.c.l.b16 %v74
    %v167 = vunpack.c.h.b16 %v74
    %v168 = vunpack.c.l.b16 %v75
    %v169 = vunpack.c.h.b16 %v75
    %v170 = vunpack.c.l.b16 %v76
    %v171 = vunpack.c.h.b16 %v76
    %v172 = vunpack.c.l.b16 %v77
    %v173 = vunpack.c.h.b16 %v77
    %v174 = vunpack.c.l.b16 %v78
    %v175 = vunpack.c.h.b16 %v78
    %v176 = vunpack.c.l.b16 %v79
    %v177 = vunpack.c.h.b16 %v79
    %v178 = vunpack.c.l.b16 %v80
    %v179 = vunpack.c.h.b16 %v80
    %v180 = vunpack.c.l.b16 %v81
    %v181 = vunpack.c.h.b16 %v81
    %v182 = vunpack.c.l.b16 %v82
    %v183 = vunpack.c.h.b16 %v82
    %v184 = vunpack.c.l.b16 %v83
    %v185 = vunpack.c.h.b16 %v83
    %v186 = vpack.c.b16 %v126, %v122
    %v187 = vpack.c.b16 %v127, %v123
    %v188 = vpack.c.b16 %v128, %v124
    %v189 = vpack.c.b16 %v129, %v125
    %v190 = vpack.c.b16 %v134, %v130
    %v191 = vpack.c.b16 %v135, %v131
    %v192 = vpack.c.b16 %v136, %v132
    %v193 = vpack.c.b16 %v137, %v133
    %v194 = vpack.c.b16 %v142, %v138
    %v195 = vpack.c.b16 %v143, %v139
    %v196 = vpack.c.b16 %v144, %v140
    %v197 = vpack.c.b16 %v145, %v141
    %v198 = vpack.c.b16 %v150, %v146
    %v199 = vpack.c.b16 %v151, %v147
    %v200 = vpack.c.b16 %v152, %v148
    %v201 = vpack.c.b16 %v153, %v149
    %v202 = vpack.c.b16 %v158, %v154
    %v203 = vpack.c.b16 %v159, %v155
    %v204 = vpack.c.b16 %v160, %v156
    %v205 = vpack.c.b16 %v161, %v157
    %v206 = vpack.c.b16 %v166, %v162
    %v207 = vpack.c.b16 %v167, %v163
    %v208 = vpack.c.b16 %v168, %v164
    %v209 = vpack.c.b16 %v169, %v165
    %v210 = vpack.c.b16 %v174, %v170
    %v211 = vpack.c.b16 %v175, %v171
    %v212 = vpack.c.b16 %v176, %v172
    %v213 = vpack.c.b16 %v177, %v173
    %v214 = vpack.c.b16 %v182, %v178
    %v215 = vpack.c.b16 %v183, %v179
    %v216 = vpack.c.b16 %v184, %v180
    %v217 = vpack.c.b16 %v185, %v181
    %250 = vmatprep.subr.bf16.mxu0 %v187
    %251 = vmatpush1.bf16.msra.mxu0 %v186
    %252 = vmatprep.subr.bf16.mxu0 %v191
    %253 = vmatpush1.bf16.msra.mxu0 %v190
    %254 = vmatprep.subr.bf16.mxu0 %v195
    %255 = vmatpush1.bf16.msra.mxu0 %v194
    %256 = vmatprep.subr.bf16.mxu0 %v199
    %257 = vmatpush1.bf16.msra.mxu0 %v198
    %258 = vmatprep.subr.bf16.mxu0 %v203
    %259 = vmatpush1.bf16.msra.mxu0 %v202
    %260 = vmatprep.subr.bf16.mxu0 %v207
    %261 = vmatpush1.bf16.msra.mxu0 %v206
    %262 = vmatprep.subr.bf16.mxu0 %v211
    %263 = vmatpush1.bf16.msra.mxu0 %v210
    %264 = vmatprep.subr.bf16.mxu0 %v215
    %265 = vmatpush1.bf16.msra.mxu0 %v214
    %266 = vmatprep.subr.bf16.mxu0 0
    %267 = vmatpush1.bf16.msra.mxu0 0
    %268 = vmatprep.subr.bf16.mxu0 0
    %269 = vmatpush1.bf16.msra.mxu0 0
    %270 = vmatprep.subr.bf16.mxu0 0
    %271 = vmatpush1.bf16.msra.mxu0 0
    %272 = vmatprep.subr.bf16.mxu0 0
    %273 = vmatpush1.bf16.msra.mxu0 0
    %274 = vmatprep.subr.bf16.mxu0 0
    %275 = vmatpush1.bf16.msra.mxu0 0
    %276 = vmatprep.subr.bf16.mxu0 0
    %277 = vmatpush1.bf16.msra.mxu0 0
    %278 = vmatprep.subr.bf16.mxu0 0
    %279 = vmatpush1.bf16.msra.mxu0 0
    %280 = vmatprep.subr.bf16.mxu0 0
    %281 = vmatpush1.bf16.msra.mxu0 0
    %282 = vmatprep.mubr.bf16.mxu0 0
    %283 = vmatmul.mubr.bf16.gmra.mrb[0].mxu0 %v88
    %v284 = vpop.f32.mrb[0].mxu0
    %v285 = vadd.f32 0.0, %v284
    %v286 = vpop.f32.mrb[0].mxu0
    %v287 = vadd.f32 0.0, %v286
    %v288 = vpop.f32.mrb[0].mxu0
    %v289 = vadd.f32 0.0, %v288
    %v290 = vpop.f32.mrb[0].mxu0
    %v291 = vadd.f32 0.0, %v290
    %292 = vdwg.mxu0
    %293 = vmatprep.subr.bf16.mxu0 %v189
    %294 = vmatpush1.bf16.msra.mxu0 %v188
    %295 = vmatprep.subr.bf16.mxu0 %v193
    %296 = vmatpush1.bf16.msra.mxu0 %v192
    %297 = vmatprep.subr.bf16.mxu0 %v197
    %298 = vmatpush1.bf16.msra.mxu0 %v196
    %299 = vmatprep.subr.bf16.mxu0 %v201
    %300 = vmatpush1.bf16.msra.mxu0 %v200
    %301 = vmatprep.subr.bf16.mxu0 %v205
    %302 = vmatpush1.bf16.msra.mxu0 %v204
    %303 = vmatprep.subr.bf16.mxu0 %v209
    %304 = vmatpush1.bf16.msra.mxu0 %v208
    %305 = vmatprep.subr.bf16.mxu0 %v213
    %306 = vmatpush1.bf16.msra.mxu0 %v212
    %307 = vmatprep.subr.bf16.mxu0 %v217
    %308 = vmatpush1.bf16.msra.mxu0 %v216
    %309 = vmatprep.subr.bf16.mxu0 0
    %310 = vmatpush1.bf16.msra.mxu0 0
    %311 = vmatprep.subr.bf16.mxu0 0
    %312 = vmatpush1.bf16.msra.mxu0 0
    %313 = vmatprep.subr.bf16.mxu0 0
    %314 = vmatpush1.bf16.msra.mxu0 0
    %315 = vmatprep.subr.bf16.mxu0 0
    %316 = vmatpush1.bf16.msra.mxu0 0
    %317 = vmatprep.subr.bf16.mxu0 0
    %318 = vmatpush1.bf16.msra.mxu0 0
    %319 = vmatprep.subr.bf16.mxu0 0
    %320 = vmatpush1.bf16.msra.mxu0 0
    %321 = vmatprep.subr.bf16.mxu0 0
    %322 = vmatpush1.bf16.msra.mxu0 0
    %323 = vmatprep.subr.bf16.mxu0 0
    %324 = vmatpush1.bf16.msra.mxu0 0
    %325 = vmatprep.mubr.bf16.mxu0 0
    %326 = vmatmul.mubr.bf16.gmra.mrb[0].mxu0 %v88
    %v327 = vpop.f32.mrb[0].mxu0
    %v328 = vadd.f32 0.0, %v327
    %v329 = vpop.f32.mrb[0].mxu0
    %v330 = vadd.f32 0.0, %v329
    %v331 = vpop.f32.mrb[0].mxu0
    %v332 = vadd.f32 0.0, %v331
    %v333 = vpop.f32.mrb[0].mxu0
    %v334 = vadd.f32 0.0, %v333
    %335 = vdwg.mxu0
    %v336 = vxor.u32 %v285, 2147483648
    %v337 = vxor.u32 %v287, 2147483648
    %v338 = vxor.u32 %v289, 2147483648
    %v339 = vxor.u32 %v291, 2147483648
    %v340 = vmul.f32 %v336, 1.442695
    %v341 = vpow.pop %v340
    %v342 = vmul.f32 %v337, 1.442695
    %v343 = vpow.pop %v342
    %v344 = vmul.f32 %v338, 1.442695
    %v345 = vpow.pop %v344
    %v346 = vmul.f32 %v339, 1.442695
    %v347 = vpow.pop %v346
    %v348 = vadd.f32 %v341, 1.0
    %v349 = vadd.f32 %v343, 1.0
    %v350 = vadd.f32 %v345, 1.0
    %v351 = vadd.f32 %v347, 1.0
    %v352 = vrcp.pop %v348
    %v353 = vmul.f32 1.0, %v352
    %v354 = vrcp.pop %v349
    %v355 = vmul.f32 1.0, %v354
    %v356 = vrcp.pop %v350
    %v357 = vmul.f32 1.0, %v356
    %v358 = vrcp.pop %v351
    %v359 = vmul.f32 1.0, %v358
    %v360 = vmul.f32 %v285, %v353
    %v361 = vmul.f32 %v287, %v355
    %v362 = vmul.f32 %v289, %v357
    %v363 = vmul.f32 %v291, %v359
    %v364 = vmul.f32 %v360, %v328
    %v365 = vmul.f32 %v361, %v330
    %v366 = vmul.f32 %v362, %v332
    %v367 = vmul.f32 %v363, %v334
    %v368 = vld [vmem:[#allocation2] sm:$0xff]
    %v369 = vld [vmem:[#allocation2 + $0x8] sm:$0xff]
    %v370 = vpack.c.bf16 %v366, %v364
    %v371 = vpack.c.bf16 %v367, %v365
    %v372 = vld [vmem:[#allocation6] sm:$0xf]
    %v373 = vld [vmem:[#allocation6 + $0x4] sm:$0xf]
    %v374 = vld [vmem:[#allocation6 + $0x8] sm:$0xf]
    %v375 = vld [vmem:[#allocation6 + $0xc] sm:$0xf]
    %v376 = vld [vmem:[#allocation6 + $0x10] sm:$0xf]
    %v377 = vld [vmem:[#allocation6 + $0x14] sm:$0xf]
    %v378 = vld [vmem:[#allocation6 + $0x18] sm:$0xf]
    %v379 = vld [vmem:[#allocation6 + $0x1c] sm:$0xf]
    %v380 = vld [vmem:[#allocation6 + $0x20] sm:$0xf]
    %v381 = vld [vmem:[#allocation6 + $0x24] sm:$0xf]
    %v382 = vld [vmem:[#allocation6 + $0x28] sm:$0xf]
    %v383 = vld [vmem:[#allocation6 + $0x2c] sm:$0xf]
    %v384 = vld [vmem:[#allocation6 + $0x30] sm:$0xf]
    %v385 = vld [vmem:[#allocation6 + $0x34] sm:$0xf]
    %v386 = vld [vmem:[#allocation6 + $0x38] sm:$0xf]
    %v387 = vld [vmem:[#allocation6 + $0x3c] sm:$0xf]
    %v388 = vld [vmem:[#allocation6 + $0x40] sm:$0xf]
    %v389 = vld [vmem:[#allocation6 + $0x44] sm:$0xf]
    %v390 = vld [vmem:[#allocation6 + $0x48] sm:$0xf]
    %v391 = vld [vmem:[#allocation6 + $0x4c] sm:$0xf]
    %v392 = vld [vmem:[#allocation6 + $0x50] sm:$0xf]
    %v393 = vld [vmem:[#allocation6 + $0x54] sm:$0xf]
    %v394 = vld [vmem:[#allocation6 + $0x58] sm:$0xf]
    %v395 = vld [vmem:[#allocation6 + $0x5c] sm:$0xf]
    %v396 = vld [vmem:[#allocation6 + $0x60] sm:$0xf]
    %v397 = vld [vmem:[#allocation6 + $0x64] sm:$0xf]
    %v398 = vld [vmem:[#allocation6 + $0x68] sm:$0xf]
    %v399 = vld [vmem:[#allocation6 + $0x6c] sm:$0xf]
    %v400 = vld [vmem:[#allocation6 + $0x70] sm:$0xf]
    %v401 = vld [vmem:[#allocation6 + $0x74] sm:$0xf]
    %v402 = vld [vmem:[#allocation6 + $0x78] sm:$0xf]
    %v403 = vld [vmem:[#allocation6 + $0x7c] sm:$0xf]
    %v436 = vunpack.c.l.b16 %v372
    %v437 = vunpack.c.l.b16 %v373
    %v438 = vunpack.c.l.b16 %v374
    %v439 = vunpack.c.l.b16 %v375
    %v440 = vunpack.c.l.b16 %v376
    %v441 = vunpack.c.l.b16 %v377
    %v442 = vunpack.c.l.b16 %v378
    %v443 = vunpack.c.l.b16 %v379
    %v444 = vunpack.c.l.b16 %v380
    %v445 = vunpack.c.l.b16 %v381
    %v446 = vunpack.c.l.b16 %v382
    %v447 = vunpack.c.l.b16 %v383
    %v448 = vunpack.c.l.b16 %v384
    %v449 = vunpack.c.l.b16 %v385
    %v450 = vunpack.c.l.b16 %v386
    %v451 = vunpack.c.l.b16 %v387
    %v452 = vunpack.c.l.b16 %v388
    %v453 = vunpack.c.l.b16 %v389
    %v454 = vunpack.c.l.b16 %v390
    %v455 = vunpack.c.l.b16 %v391
    %v456 = vunpack.c.l.b16 %v392
    %v457 = vunpack.c.l.b16 %v393
    %v458 = vunpack.c.l.b16 %v394
    %v459 = vunpack.c.l.b16 %v395
    %v460 = vunpack.c.l.b16 %v396
    %v461 = vunpack.c.l.b16 %v397
    %v462 = vunpack.c.l.b16 %v398
    %v463 = vunpack.c.l.b16 %v399
    %v464 = vunpack.c.l.b16 %v400
    %v465 = vunpack.c.l.b16 %v401
    %v466 = vunpack.c.l.b16 %v402
    %v467 = vunpack.c.l.b16 %v403
    %v468 = vpack.c.b16 %v437, %v436
    %v469 = vpack.c.b16 %v439, %v438
    %v470 = vpack.c.b16 %v441, %v440
    %v471 = vpack.c.b16 %v443, %v442
    %v472 = vpack.c.b16 %v445, %v444
    %v473 = vpack.c.b16 %v447, %v446
    %v474 = vpack.c.b16 %v449, %v448
    %v475 = vpack.c.b16 %v451, %v450
    %v476 = vpack.c.b16 %v453, %v452
    %v477 = vpack.c.b16 %v455, %v454
    %v478 = vpack.c.b16 %v457, %v456
    %v479 = vpack.c.b16 %v459, %v458
    %v480 = vpack.c.b16 %v461, %v460
    %v481 = vpack.c.b16 %v463, %v462
    %v482 = vpack.c.b16 %v465, %v464
    %v483 = vpack.c.b16 %v467, %v466
    %500 = vmatprep.subr.bf16.mxu0 0
    %501 = vmatpush1.bf16.msra.mxu0 %v468
    %502 = vmatprep.subr.bf16.mxu0 0
    %503 = vmatpush1.bf16.msra.mxu0 %v469
    %504 = vmatprep.subr.bf16.mxu0 0
    %505 = vmatpush1.bf16.msra.mxu0 %v470
    %506 = vmatprep.subr.bf16.mxu0 0
    %507 = vmatpush1.bf16.msra.mxu0 %v471
    %508 = vmatprep.subr.bf16.mxu0 0
    %509 = vmatpush1.bf16.msra.mxu0 %v472
    %510 = vmatprep.subr.bf16.mxu0 0
    %511 = vmatpush1.bf16.msra.mxu0 %v473
    %512 = vmatprep.subr.bf16.mxu0 0
    %513 = vmatpush1.bf16.msra.mxu0 %v474
    %514 = vmatprep.subr.bf16.mxu0 0
    %515 = vmatpush1.bf16.msra.mxu0 %v475
    %516 = vmatprep.subr.bf16.mxu0 0
    %517 = vmatpush1.bf16.msra.mxu0 %v476
    %518 = vmatprep.subr.bf16.mxu0 0
    %519 = vmatpush1.bf16.msra.mxu0 %v477
    %520 = vmatprep.subr.bf16.mxu0 0
    %521 = vmatpush1.bf16.msra.mxu0 %v478
    %522 = vmatprep.subr.bf16.mxu0 0
    %523 = vmatpush1.bf16.msra.mxu0 %v479
    %524 = vmatprep.subr.bf16.mxu0 0
    %525 = vmatpush1.bf16.msra.mxu0 %v480
    %526 = vmatprep.subr.bf16.mxu0 0
    %527 = vmatpush1.bf16.msra.mxu0 %v481
    %528 = vmatprep.subr.bf16.mxu0 0
    %529 = vmatpush1.bf16.msra.mxu0 %v482
    %530 = vmatprep.subr.bf16.mxu0 0
    %531 = vmatpush1.bf16.msra.mxu0 %v483
    %532 = vmatprep.mubr.bf16.mxu0 %v371
    %533 = vmatmul.mubr.bf16.gmra.mrb[0].mxu0 %v370
    %v534 = vpop.f32.mrb[0].mxu0
    %v535 = vadd.f32 0.0, %v534
    %v536 = vpop.f32.mrb[0].mxu0
    %v537 = vpop.f32.mrb[0].mxu0
    %v538 = vadd.f32 0.0, %v537
    %v539 = vpop.f32.mrb[0].mxu0
    %540 = vdwg.mxu0
    %v541 = vadd.f32 %v368, %v535
    %v542 = vadd.f32 %v369, %v538
    %543 = vst [vmem:[#allocation2] sm:$0xff] %v541
    %544 = vst [vmem:[#allocation2 + $0x8] sm:$0xff] %v542
    // Predicated region
    $region26: #{_ffn_forward.1} parent=1 // pred_check
      %p545 = pneg %p44
    $region27: #{_ffn_forward.1} parent=1 // pred_check_branch
      %547 = sbr.rel (%p545) target = $region29
    $region28: #{_ffn_forward.1} parent=1 // pred_region
      %v548 = vld [vmem:[#allocation2] sm:$0xff]
      %v549 = vld [vmem:[#allocation2 + $0x8] sm:$0xff]
      %550 = vst [vmem:[#allocation8] sm:$0xff] %v548
      %551 = vst [vmem:[#allocation8 + $0x8] sm:$0xff] %v549
    $region29: #{_ffn_forward.1} parent=1 // pred_fallthru
      _
    // Predicated region
    $region30: #{_ffn_forward.1} parent=1 // pred_check
      _
    $region31: #{_ffn_forward.1} parent=1 // pred_check_branch
      %553 = sbr.rel (0) target = $region33
    $region32: #{_ffn_forward.1} parent=1 // pred_region
      %s555 = ssub.s32 256, 256
      %556 = vsyncadd [#allocation5], %s555
      %s557 = sshll.u32 [#allocation8], 4
      %s558 = int_to_ptr.vmem [resolvable:$true] %s557
      %563 = dma.vmem_to_hbm [thread:$0]  %s558, 256, %s3, [#allocation5], 128, 128, 8
    $region33: #{_ffn_forward.1} parent=1 // pred_fallthru
      _
    // Predicated region
    $region34: #{_ffn_forward.1} parent=1 // pred_check
      _
    $region35: #{_ffn_forward.1} parent=1 // pred_check_branch
      %565 = sbr.rel (0) target = $region37
    $region36: #{_ffn_forward.1} parent=1 // pred_region
      %566 = dma.done [#allocation5], 256
    $region37: #{_ffn_forward.1} parent=1 // pred_fallthru
      _
    %567 = vsyncpa [#allocation4], 1
    %568 = vsyncpa [#allocation7], 1
    %569 = vsyncpa [#allocation5], 1

</llo_original>
